<compile_context>
chip_gen: v7x
topology: tpu7x:2x2x1
jax: 0.10.0
libtpu: 0.0.40
codegen_flags: <defaults>
</compile_context>

<pallas_src>
import jax
import jax.numpy as jnp
from jax.experimental import pallas as pl
from jax.experimental.pallas import tpu as pltpu

IN_FEATURES = 784
HIDDEN = 128
OUT_FEATURES = 10


def mnist_kernel(x_ref, w1_ref, b1_ref, w2_ref, b2_ref, out_ref):
    # x_ref:  (TB, 784) bf16     w1_ref: (784, 128) bf16   b1_ref: (1, 128) f32
    # w2_ref: (128, 10) f32      b2_ref: (1, 10)   f32     out_ref: (TB, 10) f32
    x = x_ref[...]

    # fc1 (bf16 MXU, f32 accumulation) + bias + relu
    h = jnp.dot(x, w1_ref[...], preferred_element_type=jnp.float32) + b1_ref[...]
    h = jnp.maximum(h, 0.0)

    # fc2 (tiny, keep f32 for fidelity to the original module)
    logits = jnp.dot(h, w2_ref[...], preferred_element_type=jnp.float32) + b2_ref[...]

    # numerically-stable log_softmax along dim=1
    m = jnp.max(logits, axis=-1, keepdims=True)
    shifted = logits - m
    denom = jnp.sum(jnp.exp(shifted), axis=-1, keepdims=True)
    out_ref[...] = shifted - jnp.log(denom)


def mnist_net_forward(x_nchw, params, selected_label=None, batch_tile=1024):
    """Forward pass matching MnistNet.forward semantics.

    x_nchw: (B, 1, 28, 28) float32 (NCHW like PyTorch)
    params: dict with w1 (784,128), b1 (128,), w2 (128,10), b2 (10,)
    Returns (B, 10) log-probs if selected_label is None, else (B,) softmax probs
    for that label.
    """
    B = x_nchw.shape[0]
    x_flat = x_nchw.reshape(B, -1)                       # pt.flatten(x, 1)
    assert x_flat.shape[1] == IN_FEATURES

    # bf16 activations + fc1 weights (bandwidth-dominant); fc2 + biases stay f32.
    x_bf = x_flat.astype(jnp.bfloat16)
    w1 = params["w1"].astype(jnp.bfloat16)
    b1 = params["b1"].reshape(1, HIDDEN).astype(jnp.float32)
    w2 = params["w2"].astype(jnp.float32)
    b2 = params["b2"].reshape(1, OUT_FEATURES).astype(jnp.float32)

    # Batch tile: full batch if small, else a multiple-of-8 tile sized for v7x's
    # 32 MiB default scoped VMEM (TB=1024 bf16 ~ 1.6 MiB per x buffer).
    tb = B if B <= batch_tile else batch_tile
    num_tiles = pl.cdiv(B, tb)

    # Triple-buffer the x stream only when there are enough grid steps to matter.
    x_spec_kwargs = {}
    if num_tiles > 2:
        x_spec_kwargs["pipeline_mode"] = pl.Buffered(3)
    x_spec = pl.BlockSpec((tb, IN_FEATURES), lambda i: (i, 0), **x_spec_kwargs)

    out = pl.pallas_call(
        mnist_kernel,
        out_shape=jax.ShapeDtypeStruct((B, OUT_FEATURES), jnp.float32),
        grid_spec=pltpu.PrefetchScalarGridSpec(
            num_scalar_prefetch=0,
            grid=(num_tiles,),
            in_specs=[
                x_spec,                                                   # x tile
                pl.BlockSpec((IN_FEATURES, HIDDEN), lambda i: (0, 0)),    # w1 (resident)
                pl.BlockSpec((1, HIDDEN), lambda i: (0, 0)),              # b1
                pl.BlockSpec((HIDDEN, OUT_FEATURES), lambda i: (0, 0)),   # w2
                pl.BlockSpec((1, OUT_FEATURES), lambda i: (0, 0)),        # b2
            ],
            out_specs=pl.BlockSpec((tb, OUT_FEATURES), lambda i: (i, 0)),
        ),
        compiler_params=pltpu.CompilerParams(
            dimension_semantics=("parallel",),          # megacore on v7x, neutral on v5e/v6e
            vmem_limit_bytes=32 * 1024 * 1024,          # explicit budget, fits v5e/v6e/v7x
        ),
    )(x_bf, w1, b1, w2, b2)

    if selected_label is None:
        return out                                      # log_softmax, shape (B, 10)
    # softmax[:, label] == exp(log_softmax[:, label]); avoids a second kernel variant.
    return jnp.exp(out[:, selected_label])              # shape (B,)


def init_params(key):
    """Deterministic init matching nn.Linear(784,128) / nn.Linear(128,10) shapes.

    Weights stored pre-transposed as (in_features, out_features) so the kernel
    computes x @ W + b, matching PyTorch's x @ W_pt.T + b.
    """
    k1, k2, k3, k4 = jax.random.split(key, 4)
    bound1 = 1.0 / (IN_FEATURES ** 0.5)
    bound2 = 1.0 / (HIDDEN ** 0.5)
    return {
        "w1": jax.random.uniform(k1, (IN_FEATURES, HIDDEN), jnp.float32, -bound1, bound1),
        "b1": jax.random.uniform(k2, (HIDDEN,), jnp.float32, -bound1, bound1),
        "w2": jax.random.uniform(k3, (HIDDEN, OUT_FEATURES), jnp.float32, -bound2, bound2),
        "b2": jax.random.uniform(k4, (OUT_FEATURES,), jnp.float32, -bound2, bound2),
    }


if __name__ == "__main__":
    key = jax.random.PRNGKey(0)
    pkey, xkey = jax.random.split(key)

    params = init_params(pkey)
    # MNIST-shaped input, small batch: NCHW (B, 1, 28, 28) -> 784 features.
    B = 2
    x = jax.random.normal(xkey, (B, 1, 28, 28), dtype=jnp.float32)

    # Default path: log_softmax output, shape (B, 10).
    log_probs = jax.block_until_ready(mnist_net_forward(x, params, selected_label=None))

    # selected_label path: softmax[:, label], shape (B,).
    sel = jax.block_until_ready(mnist_net_forward(x, params, selected_label=3))

    # Pure-JAX reference mirroring the kernel's bf16 fc1 / f32 fc2 arithmetic.
    x_flat = x.reshape(B, -1)
    h_ref = jnp.maximum(
        jnp.dot(x_flat.astype(jnp.bfloat16), params["w1"].astype(jnp.bfloat16),
                preferred_element_type=jnp.float32) + params["b1"],
        0.0,
    )
    logits_ref = h_ref @ params["w2"] + params["b2"]
    lsm_ref = jax.nn.log_softmax(logits_ref, axis=1)
    sm_ref = jax.nn.softmax(logits_ref, axis=1)[:, 3]

    assert log_probs.shape == (B, OUT_FEATURES)
    assert sel.shape == (B,)
    assert bool(jnp.all(jnp.isfinite(log_probs))), "non-finite log-probs"
    assert jnp.allclose(log_probs, lsm_ref, atol=1e-4), "log_softmax mismatch"
    assert jnp.allclose(sel, sm_ref, atol=1e-4), "softmax selected_label mismatch"

    print("KERNEL_OK")
</pallas_src>

<mosaic_0001>
module attributes {stable_mosaic.version = 11 : i64} {
  func.func @mnist_kernel(%arg0: i32, %arg1: memref<2x784xbf16, #tpu.memory_space<vmem>>, %arg2: memref<784x128xbf16, #tpu.memory_space<vmem>>, %arg3: memref<1x128xf32, #tpu.memory_space<vmem>>, %arg4: memref<128x10xf32, #tpu.memory_space<vmem>>, %arg5: memref<1x10xf32, #tpu.memory_space<vmem>>, %arg6: memref<2x10xf32, #tpu.memory_space<vmem>>) attributes {dimension_semantics = [#tpu.dimension_semantics<parallel>], iteration_bounds = array<i64: 1>, scalar_prefetch = 0 : i64, scratch_operands = 0 : i64, tpu.core_type = #tpu.core_type<tc>, window_params = [{transform_indices = @transform_0, window_bounds = array<i64: 2, 784>}, {pipeline_mode = #tpu.pipeline_mode<synchronous>, transform_indices = @transform_1, window_bounds = array<i64: 784, 128>}, {pipeline_mode = #tpu.pipeline_mode<synchronous>, transform_indices = @transform_2, window_bounds = array<i64: 1, 128>}, {pipeline_mode = #tpu.pipeline_mode<synchronous>, transform_indices = @transform_3, window_bounds = array<i64: 128, 10>}, {pipeline_mode = #tpu.pipeline_mode<synchronous>, transform_indices = @transform_4, window_bounds = array<i64: 1, 10>}, {transform_indices = @transform_5, window_bounds = array<i64: 2, 10>}]} {
    %c0 = arith.constant 0 : index
    %c0_0 = arith.constant 0 : index
    %0 = vector.load %arg1[%c0, %c0_0] : memref<2x784xbf16, #tpu.memory_space<vmem>>, vector<2x784xbf16>
    %c0_1 = arith.constant 0 : index
    %c0_2 = arith.constant 0 : index
    %1 = vector.load %arg2[%c0_1, %c0_2] : memref<784x128xbf16, #tpu.memory_space<vmem>>, vector<784x128xbf16>
    %cst = arith.constant dense<0.000000e+00> : vector<2x128xf32>
    %2 = tpu.matmul %0, %1, %cst {dimension_numbers = #tpu.dot_dimension_numbers<[1], [0], [0], [1], [0, 0, 1, 1], [], []>} : vector<2x784xbf16>, vector<784x128xbf16>, vector<2x128xf32> -> vector<2x128xf32>
    %c0_3 = arith.constant 0 : index
    %c0_4 = arith.constant 0 : index
    %3 = vector.load %arg3[%c0_3, %c0_4] : memref<1x128xf32, #tpu.memory_space<vmem>>, vector<1x128xf32>
    %4 = vector.broadcast %3 : vector<1x128xf32> to vector<2x128xf32>
    %5 = arith.addf %2, %4 : vector<2x128xf32>
    %cst_5 = arith.constant 0.000000e+00 : f32
    %6 = vector.broadcast %cst_5 : f32 to vector<2x128xf32>
    %7 = arith.maximumf %5, %6 : vector<2x128xf32>
    %c0_6 = arith.constant 0 : index
    %c0_7 = arith.constant 0 : index
    %8 = vector.load %arg4[%c0_6, %c0_7] : memref<128x10xf32, #tpu.memory_space<vmem>>, vector<128x10xf32>
    %cst_8 = arith.constant dense<0.000000e+00> : vector<2x10xf32>
    %9 = tpu.matmul %7, %8, %cst_8 {dimension_numbers = #tpu.dot_dimension_numbers<[1], [0], [0], [1], [0, 0, 1, 1], [], []>} : vector<2x128xf32>, vector<128x10xf32>, vector<2x10xf32> -> vector<2x10xf32>
    %c0_9 = arith.constant 0 : index
    %c0_10 = arith.constant 0 : index
    %10 = vector.load %arg5[%c0_9, %c0_10] : memref<1x10xf32, #tpu.memory_space<vmem>>, vector<1x10xf32>
    %11 = vector.broadcast %10 : vector<1x10xf32> to vector<2x10xf32>
    %12 = arith.addf %9, %11 : vector<2x10xf32>
    %cst_11 = arith.constant dense<0xFF800000> : vector<2xf32>
    %13 = vector.multi_reduction <maximumf>, %12, %cst_11 [1] : vector<2x10xf32> to vector<2xf32>
    %14 = vector.shape_cast %13 : vector<2xf32> to vector<2x1xf32>
    %15 = vector.broadcast %14 : vector<2x1xf32> to vector<2x10xf32>
    %16 = arith.subf %12, %15 : vector<2x10xf32>
    %17 = math.exp %16 : vector<2x10xf32>
    %cst_12 = arith.constant dense<0.000000e+00> : vector<2xf32>
    %18 = vector.multi_reduction <add>, %17, %cst_12 [1] : vector<2x10xf32> to vector<2xf32>
    %19 = vector.shape_cast %18 : vector<2xf32> to vector<2x1xf32>
    %20 = math.log %19 : vector<2x1xf32>
    %21 = vector.broadcast %20 : vector<2x1xf32> to vector<2x10xf32>
    %22 = arith.subf %16, %21 : vector<2x10xf32>
    %c0_13 = arith.constant 0 : index
    %c0_14 = arith.constant 0 : index
    %23 = vector.load %arg6[%c0_13, %c0_14] : memref<2x10xf32, #tpu.memory_space<vmem>>, vector<2x10xf32>
    tpu.vector_store %arg6[%c0_13, %c0_14], %22 {strides = array<i32>} : memref<2x10xf32, #tpu.memory_space<vmem>>, vector<2x10xf32>,
    return
  }
  func.func @transform_0(%arg0: i32) -> (i32, i32) {
    %c0_i32 = arith.constant 0 : i32
    %c0_i32_0 = arith.constant 0 : i32
    return %arg0, %c0_i32 : i32, i32
  }
  func.func @transform_1(%arg0: i32) -> (i32, i32) {
    %c0_i32 = arith.constant 0 : i32
    %c0_i32_0 = arith.constant 0 : i32
    %c0_i32_1 = arith.constant 0 : i32
    return %c0_i32, %c0_i32_0 : i32, i32
  }
  func.func @transform_2(%arg0: i32) -> (i32, i32) {
    %c0_i32 = arith.constant 0 : i32
    %c0_i32_0 = arith.constant 0 : i32
    %c0_i32_1 = arith.constant 0 : i32
    return %c0_i32, %c0_i32_0 : i32, i32
  }
  func.func @transform_3(%arg0: i32) -> (i32, i32) {
    %c0_i32 = arith.constant 0 : i32
    %c0_i32_0 = arith.constant 0 : i32
    %c0_i32_1 = arith.constant 0 : i32
    return %c0_i32, %c0_i32_0 : i32, i32
  }
  func.func @transform_4(%arg0: i32) -> (i32, i32) {
    %c0_i32 = arith.constant 0 : i32
    %c0_i32_0 = arith.constant 0 : i32
    %c0_i32_1 = arith.constant 0 : i32
    return %c0_i32, %c0_i32_0 : i32, i32
  }
  func.func @transform_5(%arg0: i32) -> (i32, i32) {
    %c0_i32 = arith.constant 0 : i32
    %c0_i32_0 = arith.constant 0 : i32
    return %arg0, %c0_i32 : i32, i32
  }
}

</mosaic_0001>

<llo_original>
// kernel: tpu_custom_call.1
$region0: #{tpu_custom_call.1}
  #allocation0 [shape = 'u32[]', space=smem, size = 0x4, offset = 0x4, fixed_abs, tag = 'smem constant byte address 0x4 - core index']
  #allocation1 [shape = 'u32[144,128]{1,0:T(1,128)}', space=vmem, size = 0x12000, scoped, tag = 'internal scratch']
  %s0 = inlined_call_operand.vmem [shape: bf16[2,784], index: 0, kind: input, shape index: {}]
  %s1 = inlined_call_operand.hbm [shape: bf16[784,128], index: 1, kind: input, shape index: {}]
  %s2 = inlined_call_operand.vmem [shape: f32[1,128], index: 2, kind: input, shape index: {}]
  %s3 = inlined_call_operand.vmem [shape: f32[128,10], index: 3, kind: input, shape index: {}]
  %s4 = inlined_call_operand.vmem [shape: f32[1,10], index: 4, kind: input, shape index: {}]
  %s5 = inlined_call_operand.hbm [shape: f32[2,10], index: 5, kind: output, shape index: {}]
  %s6 = sld [smem:[#allocation0]]
  $region34: #{tpu_custom_call.1} parent=0
    _
  %s8 = ssub.s32 1, %s6
  %s9 = scalar_select 0, %s8, %s6
  $region1: #{tpu_custom_call.1} parent=0
    #allocation2 [shape = 'u8[200704]{0}', space=vmem, size = 0x31000, scoped, tag = 'input window, operand 1, single buffered']
    #allocation3 [shape = 's32[1]{0}', space=sflag, size = 0x4, scoped, tag = 'scoped memory for tpu_custom_call.1']
    #allocation4 [shape = 's32[1]{0}', space=sflag, size = 0x4, scoped, tag = 'scoped memory for tpu_custom_call.1']
    #allocation5 [shape = 'u8[1024]{0}', space=vmem, size = 0x400, scoped, tag = 'output window, operand 0, single buffered']
    %10 = vsyncpa [#allocation3], 0
    %11 = vsyncpa [#allocation4], 0
    // Predicated region
    $region2: #{tpu_custom_call.1} parent=1 // pred_check
      _
    $region3: #{tpu_custom_call.1} parent=1 // pred_check_branch
      %13 = sbr.rel (0) target = $region5
    $region4: #{tpu_custom_call.1} parent=1 // pred_region
      _
    $region5: #{tpu_custom_call.1} parent=1 // pred_fallthru
      _
    // Predicated region
    $region6: #{tpu_custom_call.1} parent=1 // pred_check
      _
    $region7: #{tpu_custom_call.1} parent=1 // pred_check_branch
      %15 = sbr.rel (0) target = $region9
    $region8: #{tpu_custom_call.1} parent=1 // pred_region
      %s17 = ssub.s32 6272, 6272
      %18 = vsyncadd [#allocation3], %s17
      %s19 = sshll.u32 [#allocation2], 4
      %s20 = int_to_ptr.vmem [resolvable:$true] %s19
      %25 = dma.hbm_to_vmem [thread:$0]  %s1, 6272, %s20, [#allocation3], 64, 64, 4
    $region9: #{tpu_custom_call.1} parent=1 // pred_fallthru
      _
    // Predicated region
    $region10: #{tpu_custom_call.1} parent=1 // pred_check
      _
    $region11: #{tpu_custom_call.1} parent=1 // pred_check_branch
      %27 = sbr.rel (0) target = $region13
    $region12: #{tpu_custom_call.1} parent=1 // pred_region
      _
    $region13: #{tpu_custom_call.1} parent=1 // pred_fallthru
      _
    // Predicated region
    $region14: #{tpu_custom_call.1} parent=1 // pred_check
      _
    $region15: #{tpu_custom_call.1} parent=1 // pred_check_branch
      %29 = sbr.rel (0) target = $region17
    $region16: #{tpu_custom_call.1} parent=1 // pred_region
      _
    $region17: #{tpu_custom_call.1} parent=1 // pred_fallthru
      _
    // Predicated region
    $region18: #{tpu_custom_call.1} parent=1 // pred_check
      _
    $region19: #{tpu_custom_call.1} parent=1 // pred_check_branch
      %31 = sbr.rel (0) target = $region21
    $region20: #{tpu_custom_call.1} parent=1 // pred_region
      _
    $region21: #{tpu_custom_call.1} parent=1 // pred_fallthru
      _
    // Predicated region
    $region22: #{tpu_custom_call.1} parent=1 // pred_check
      _
    $region23: #{tpu_custom_call.1} parent=1 // pred_check_branch
      %33 = sbr.rel (0) target = $region25
    $region24: #{tpu_custom_call.1} parent=1 // pred_region
      %34 = dma.done [#allocation3], 6272
    $region25: #{tpu_custom_call.1} parent=1 // pred_fallthru
      _
    %v36 = vld [vmem:[%s0] sm:$0x7f]
    %v37 = vld [vmem:[#allocation2] sm:$0xf]
    %v38 = vld [vmem:[#allocation2 + $0x4] sm:$0xf]
    %v39 = vld [vmem:[#allocation2 + $0x8] sm:$0xf]
    %v40 = vld [vmem:[#allocation2 + $0xc] sm:$0xf]
    %v41 = vld [vmem:[#allocation2 + $0x10] sm:$0xf]
    %v42 = vld [vmem:[#allocation2 + $0x14] sm:$0xf]
    %v43 = vld [vmem:[#allocation2 + $0x18] sm:$0xf]
    %v44 = vld [vmem:[#allocation2 + $0x1c] sm:$0xf]
    %v45 = vld [vmem:[#allocation2 + $0x20] sm:$0xf]
    %v46 = vld [vmem:[#allocation2 + $0x24] sm:$0xf]
    %v47 = vld [vmem:[#allocation2 + $0x28] sm:$0xf]
    %v48 = vld [vmem:[#allocation2 + $0x2c] sm:$0xf]
    %v49 = vld [vmem:[#allocation2 + $0x30] sm:$0xf]
    %v50 = vld [vmem:[#allocation2 + $0x34] sm:$0xf]
    %v51 = vld [vmem:[#allocation2 + $0x38] sm:$0xf]
    %v52 = vld [vmem:[#allocation2 + $0x3c] sm:$0xf]
    %v53 = vld [vmem:[#allocation2 + $0x40] sm:$0xf]
    %v54 = vld [vmem:[#allocation2 + $0x44] sm:$0xf]
    %v55 = vld [vmem:[#allocation2 + $0x48] sm:$0xf]
    %v56 = vld [vmem:[#allocation2 + $0x4c] sm:$0xf]
    %v57 = vld [vmem:[#allocation2 + $0x50] sm:$0xf]
    %v58 = vld [vmem:[#allocation2 + $0x54] sm:$0xf]
    %v59 = vld [vmem:[#allocation2 + $0x58] sm:$0xf]
    %v60 = vld [vmem:[#allocation2 + $0x5c] sm:$0xf]
    %v61 = vld [vmem:[#allocation2 + $0x60] sm:$0xf]
    %v62 = vld [vmem:[#allocation2 + $0x64] sm:$0xf]
    %v63 = vld [vmem:[#allocation2 + $0x68] sm:$0xf]
    %v64 = vld [vmem:[#allocation2 + $0x6c] sm:$0xf]
    %v65 = vld [vmem:[#allocation2 + $0x70] sm:$0xf]
    %v66 = vld [vmem:[#allocation2 + $0x74] sm:$0xf]
    %v67 = vld [vmem:[#allocation2 + $0x78] sm:$0xf]
    %v68 = vld [vmem:[#allocation2 + $0x7c] sm:$0xf]
    %v69 = vld [vmem:[#allocation2 + $0x80] sm:$0xf]
    %v70 = vld [vmem:[#allocation2 + $0x84] sm:$0xf]
    %v71 = vld [vmem:[#allocation2 + $0x88] sm:$0xf]
    %v72 = vld [vmem:[#allocation2 + $0x8c] sm:$0xf]
    %v73 = vld [vmem:[#allocation2 + $0x90] sm:$0xf]
    %v74 = vld [vmem:[#allocation2 + $0x94] sm:$0xf]
    %v75 = vld [vmem:[#allocation2 + $0x98] sm:$0xf]
    %v76 = vld [vmem:[#allocation2 + $0x9c] sm:$0xf]
    %v77 = vld [vmem:[#allocation2 + $0xa0] sm:$0xf]
    %v78 = vld [vmem:[#allocation2 + $0xa4] sm:$0xf]
    %v79 = vld [vmem:[#allocation2 + $0xa8] sm:$0xf]
    %v80 = vld [vmem:[#allocation2 + $0xac] sm:$0xf]
    %v81 = vld [vmem:[#allocation2 + $0xb0] sm:$0xf]
    %v82 = vld [vmem:[#allocation2 + $0xb4] sm:$0xf]
    %v83 = vld [vmem:[#allocation2 + $0xb8] sm:$0xf]
    %v84 = vld [vmem:[#allocation2 + $0xbc] sm:$0xf]
    %v85 = vld [vmem:[#allocation2 + $0xc0] sm:$0xf]
    %v86 = vld [vmem:[#allocation2 + $0xc4] sm:$0xf]
    %v87 = vld [vmem:[#allocation2 + $0xc8] sm:$0xf]
    %v88 = vld [vmem:[#allocation2 + $0xcc] sm:$0xf]
    %v89 = vld [vmem:[#allocation2 + $0xd0] sm:$0xf]
    %v90 = vld [vmem:[#allocation2 + $0xd4] sm:$0xf]
    %v91 = vld [vmem:[#allocation2 + $0xd8] sm:$0xf]
    %v92 = vld [vmem:[#allocation2 + $0xdc] sm:$0xf]
    %v93 = vld [vmem:[#allocation2 + $0xe0] sm:$0xf]
    %v94 = vld [vmem:[#allocation2 + $0xe4] sm:$0xf]
    %v95 = vld [vmem:[#allocation2 + $0xe8] sm:$0xf]
    %v96 = vld [vmem:[#allocation2 + $0xec] sm:$0xf]
    %v97 = vld [vmem:[#allocation2 + $0xf0] sm:$0xf]
    %v98 = vld [vmem:[#allocation2 + $0xf4] sm:$0xf]
    %v99 = vld [vmem:[#allocation2 + $0xf8] sm:$0xf]
    %v100 = vld [vmem:[#allocation2 + $0xfc] sm:$0xf]
    %v101 = vld [vmem:[#allocation2 + $0x100] sm:$0xf]
    %v102 = vld [vmem:[#allocation2 + $0x104] sm:$0xf]
    %v103 = vld [vmem:[#allocation2 + $0x108] sm:$0xf]
    %v104 = vld [vmem:[#allocation2 + $0x10c] sm:$0xf]
    %v105 = vld [vmem:[#allocation2 + $0x110] sm:$0xf]
    %v106 = vld [vmem:[#allocation2 + $0x114] sm:$0xf]
    %v107 = vld [vmem:[#allocation2 + $0x118] sm:$0xf]
    %v108 = vld [vmem:[#allocation2 + $0x11c] sm:$0xf]
    %v109 = vld [vmem:[#allocation2 + $0x120] sm:$0xf]
    %v110 = vld [vmem:[#allocation2 + $0x124] sm:$0xf]
    %v111 = vld [vmem:[#allocation2 + $0x128] sm:$0xf]
    %v112 = vld [vmem:[#allocation2 + $0x12c] sm:$0xf]
    %v113 = vld [vmem:[#allocation2 + $0x130] sm:$0xf]
    %v114 = vld [vmem:[#allocation2 + $0x134] sm:$0xf]
    %v115 = vld [vmem:[#allocation2 + $0x138] sm:$0xf]
    %v116 = vld [vmem:[#allocation2 + $0x13c] sm:$0xf]
    %v117 = vld [vmem:[#allocation2 + $0x140] sm:$0xf]
    %v118 = vld [vmem:[#allocation2 + $0x144] sm:$0xf]
    %v119 = vld [vmem:[#allocation2 + $0x148] sm:$0xf]
    %v120 = vld [vmem:[#allocation2 + $0x14c] sm:$0xf]
    %v121 = vld [vmem:[#allocation2 + $0x150] sm:$0xf]
    %v122 = vld [vmem:[#allocation2 + $0x154] sm:$0xf]
    %v123 = vld [vmem:[#allocation2 + $0x158] sm:$0xf]
    %v124 = vld [vmem:[#allocation2 + $0x15c] sm:$0xf]
    %v125 = vld [vmem:[#allocation2 + $0x160] sm:$0xf]
    %v126 = vld [vmem:[#allocation2 + $0x164] sm:$0xf]
    %v127 = vld [vmem:[#allocation2 + $0x168] sm:$0xf]
    %v128 = vld [vmem:[#allocation2 + $0x16c] sm:$0xf]
    %v129 = vld [vmem:[#allocation2 + $0x170] sm:$0xf]
    %v130 = vld [vmem:[#allocation2 + $0x174] sm:$0xf]
    %v131 = vld [vmem:[#allocation2 + $0x178] sm:$0xf]
    %v132 = vld [vmem:[#allocation2 + $0x17c] sm:$0xf]
    %v133 = vld [vmem:[#allocation2 + $0x180] sm:$0xf]
    %v134 = vld [vmem:[#allocation2 + $0x184] sm:$0xf]
    %v135 = vld [vmem:[%s2] sm:$0x1]
    %v137 = vlaneseq
    %v138 = vshrl.u32 %v137, 7
    %v139 = vsub.s32 0, %v138
    %v140 = vrot.slane %v135, %v139
    %v143 = vcombine.high %v36, %v36
    %v145 = vunpack.c.l.s4 1966171168
    %v146 = vunpack.c.0.s8 %v145
    %v147 = vlaneseq
    %v148 = vshrl.u32 %v147, 7
    %v149 = vsub.s32 %v146, %v148
    %v150 = vrot.slane %v36, %v149
    %v152 = vunpack.c.l.s4 1966171168
    %v153 = vunpack.c.0.s8 %v152
    %v154 = vlaneseq
    %v155 = vshrl.u32 %v154, 7
    %v156 = vsub.s32 %v153, %v155
    %v157 = vrot.slane %v143, %v156
    %v158 = vcombine.high %v150, %v150
    %v159 = vcombine.high %v157, %v157
    %v161 = vunpack.c.l.s4 1966171168
    %v162 = vunpack.c.0.s8 %v161
    %v163 = vlaneseq
    %v164 = vshrl.u32 %v163, 7
    %v165 = vsub.s32 %v162, %v164
    %v166 = vrot.slane %v150, %v165
    %v168 = vunpack.c.l.s4 1966171168
    %v169 = vunpack.c.0.s8 %v168
    %v170 = vlaneseq
    %v171 = vshrl.u32 %v170, 7
    %v172 = vsub.s32 %v169, %v171
    %v173 = vrot.slane %v157, %v172
    %v175 = vunpack.c.l.s4 1966171168
    %v176 = vunpack.c.0.s8 %v175
    %v177 = vlaneseq
    %v178 = vshrl.u32 %v177, 7
    %v179 = vsub.s32 %v176, %v178
    %v180 = vrot.slane %v158, %v179
    %v182 = vunpack.c.l.s4 1966171168
    %v183 = vunpack.c.0.s8 %v182
    %v184 = vlaneseq
    %v185 = vshrl.u32 %v184, 7
    %v186 = vsub.s32 %v183, %v185
    %v187 = vrot.slane %v159, %v186
    %v188 = vcombine.high %v166, %v166
    %v189 = vcombine.high %v173, %v173
    %v190 = vcombine.high %v180, %v180
    %v295 = vunpack.c.l.b16 %v37
    %v296 = vunpack.c.l.b16 %v38
    %v297 = vunpack.c.l.b16 %v39
    %v298 = vunpack.c.l.b16 %v40
    %v299 = vunpack.c.l.b16 %v41
    %v300 = vunpack.c.l.b16 %v42
    %v301 = vunpack.c.l.b16 %v43
    %v302 = vunpack.c.l.b16 %v44
    %v303 = vunpack.c.l.b16 %v45
    %v304 = vunpack.c.l.b16 %v46
    %v305 = vunpack.c.l.b16 %v47
    %v306 = vunpack.c.l.b16 %v48
    %v307 = vunpack.c.l.b16 %v49
    %v308 = vunpack.c.l.b16 %v50
    %v309 = vunpack.c.l.b16 %v51
    %v310 = vunpack.c.l.b16 %v52
    %v311 = vunpack.c.l.b16 %v53
    %v312 = vunpack.c.l.b16 %v54
    %v313 = vunpack.c.l.b16 %v55
    %v314 = vunpack.c.l.b16 %v56
    %v315 = vunpack.c.l.b16 %v57
    %v316 = vunpack.c.l.b16 %v58
    %v317 = vunpack.c.l.b16 %v59
    %v318 = vunpack.c.l.b16 %v60
    %v319 = vunpack.c.l.b16 %v61
    %v320 = vunpack.c.l.b16 %v62
    %v321 = vunpack.c.l.b16 %v63
    %v322 = vunpack.c.l.b16 %v64
    %v323 = vunpack.c.l.b16 %v65
    %v324 = vunpack.c.l.b16 %v66
    %v325 = vunpack.c.l.b16 %v67
    %v326 = vunpack.c.l.b16 %v68
    %v327 = vunpack.c.l.b16 %v69
    %v328 = vunpack.c.l.b16 %v70
    %v329 = vunpack.c.l.b16 %v71
    %v330 = vunpack.c.l.b16 %v72
    %v331 = vunpack.c.l.b16 %v73
    %v332 = vunpack.c.l.b16 %v74
    %v333 = vunpack.c.l.b16 %v75
    %v334 = vunpack.c.l.b16 %v76
    %v335 = vunpack.c.l.b16 %v77
    %v336 = vunpack.c.l.b16 %v78
    %v337 = vunpack.c.l.b16 %v79
    %v338 = vunpack.c.l.b16 %v80
    %v339 = vunpack.c.l.b16 %v81
    %v340 = vunpack.c.l.b16 %v82
    %v341 = vunpack.c.l.b16 %v83
    %v342 = vunpack.c.l.b16 %v84
    %v343 = vunpack.c.l.b16 %v85
    %v344 = vunpack.c.l.b16 %v86
    %v345 = vunpack.c.l.b16 %v87
    %v346 = vunpack.c.l.b16 %v88
    %v347 = vunpack.c.l.b16 %v89
    %v348 = vunpack.c.l.b16 %v90
    %v349 = vunpack.c.l.b16 %v91
    %v350 = vunpack.c.l.b16 %v92
    %v351 = vunpack.c.l.b16 %v93
    %v352 = vunpack.c.l.b16 %v94
    %v353 = vunpack.c.l.b16 %v95
    %v354 = vunpack.c.l.b16 %v96
    %v355 = vunpack.c.l.b16 %v97
    %v356 = vunpack.c.l.b16 %v98
    %v357 = vunpack.c.l.b16 %v99
    %v358 = vunpack.c.l.b16 %v100
    %v359 = vunpack.c.l.b16 %v101
    %v360 = vunpack.c.l.b16 %v102
    %v361 = vunpack.c.l.b16 %v103
    %v362 = vunpack.c.l.b16 %v104
    %v363 = vunpack.c.l.b16 %v105
    %v364 = vunpack.c.l.b16 %v106
    %v365 = vunpack.c.l.b16 %v107
    %v366 = vunpack.c.l.b16 %v108
    %v367 = vunpack.c.l.b16 %v109
    %v368 = vunpack.c.l.b16 %v110
    %v369 = vunpack.c.l.b16 %v111
    %v370 = vunpack.c.l.b16 %v112
    %v371 = vunpack.c.l.b16 %v113
    %v372 = vunpack.c.l.b16 %v114
    %v373 = vunpack.c.l.b16 %v115
    %v374 = vunpack.c.l.b16 %v116
    %v375 = vunpack.c.l.b16 %v117
    %v376 = vunpack.c.l.b16 %v118
    %v377 = vunpack.c.l.b16 %v119
    %v378 = vunpack.c.l.b16 %v120
    %v379 = vunpack.c.l.b16 %v121
    %v380 = vunpack.c.l.b16 %v122
    %v381 = vunpack.c.l.b16 %v123
    %v382 = vunpack.c.l.b16 %v124
    %v383 = vunpack.c.l.b16 %v125
    %v384 = vunpack.c.l.b16 %v126
    %v385 = vunpack.c.l.b16 %v127
    %v386 = vunpack.c.l.b16 %v128
    %v387 = vunpack.c.l.b16 %v129
    %v388 = vunpack.c.l.b16 %v130
    %v389 = vunpack.c.l.b16 %v131
    %v390 = vunpack.c.l.b16 %v132
    %v391 = vunpack.c.l.b16 %v133
    %v392 = vunpack.c.l.b16 %v134
    %v393 = vpack.c.b16 %v296, %v295
    %v394 = vpack.c.b16 %v298, %v297
    %v395 = vpack.c.b16 %v300, %v299
    %v396 = vpack.c.b16 %v302, %v301
    %v397 = vpack.c.b16 %v304, %v303
    %v398 = vpack.c.b16 %v306, %v305
    %v399 = vpack.c.b16 %v308, %v307
    %v400 = vpack.c.b16 %v310, %v309
    %v401 = vpack.c.b16 %v312, %v311
    %v402 = vpack.c.b16 %v314, %v313
    %v403 = vpack.c.b16 %v316, %v315
    %v404 = vpack.c.b16 %v318, %v317
    %v405 = vpack.c.b16 %v320, %v319
    %v406 = vpack.c.b16 %v322, %v321
    %v407 = vpack.c.b16 %v324, %v323
    %v408 = vpack.c.b16 %v326, %v325
    %v409 = vpack.c.b16 %v328, %v327
    %v410 = vpack.c.b16 %v330, %v329
    %v411 = vpack.c.b16 %v332, %v331
    %v412 = vpack.c.b16 %v334, %v333
    %v413 = vpack.c.b16 %v336, %v335
    %v414 = vpack.c.b16 %v338, %v337
    %v415 = vpack.c.b16 %v340, %v339
    %v416 = vpack.c.b16 %v342, %v341
    %v417 = vpack.c.b16 %v344, %v343
    %v418 = vpack.c.b16 %v346, %v345
    %v419 = vpack.c.b16 %v348, %v347
    %v420 = vpack.c.b16 %v350, %v349
    %v421 = vpack.c.b16 %v352, %v351
    %v422 = vpack.c.b16 %v354, %v353
    %v423 = vpack.c.b16 %v356, %v355
    %v424 = vpack.c.b16 %v358, %v357
    %v425 = vpack.c.b16 %v360, %v359
    %v426 = vpack.c.b16 %v362, %v361
    %v427 = vpack.c.b16 %v364, %v363
    %v428 = vpack.c.b16 %v366, %v365
    %v429 = vpack.c.b16 %v368, %v367
    %v430 = vpack.c.b16 %v370, %v369
    %v431 = vpack.c.b16 %v372, %v371
    %v432 = vpack.c.b16 %v374, %v373
    %v433 = vpack.c.b16 %v376, %v375
    %v434 = vpack.c.b16 %v378, %v377
    %v435 = vpack.c.b16 %v380, %v379
    %v436 = vpack.c.b16 %v382, %v381
    %v437 = vpack.c.b16 %v384, %v383
    %v438 = vpack.c.b16 %v386, %v385
    %v439 = vpack.c.b16 %v388, %v387
    %v440 = vpack.c.b16 %v390, %v389
    %v441 = vpack.c.b16 %v392, %v391
    %vm491 = vcmask 130048
    %v493 = vsel %vm491, %v189, 0
    %495 = vmatprep.subr.bf16.mxu0 0
    %496 = vmatpush1.bf16.msra.mxu0 %v393
    %497 = vmatprep.subr.bf16.mxu0 0
    %498 = vmatpush1.bf16.msra.mxu0 %v394
    %499 = vmatprep.subr.bf16.mxu0 0
    %500 = vmatpush1.bf16.msra.mxu0 %v395
    %501 = vmatprep.subr.bf16.mxu0 0
    %502 = vmatpush1.bf16.msra.mxu0 %v396
    %503 = vmatprep.subr.bf16.mxu0 0
    %504 = vmatpush1.bf16.msra.mxu0 %v397
    %505 = vmatprep.subr.bf16.mxu0 0
    %506 = vmatpush1.bf16.msra.mxu0 %v398
    %507 = vmatprep.subr.bf16.mxu0 0
    %508 = vmatpush1.bf16.msra.mxu0 %v399
    %509 = vmatprep.subr.bf16.mxu0 0
    %510 = vmatpush1.bf16.msra.mxu0 %v400
    %511 = vmatprep.subr.bf16.mxu0 0
    %512 = vmatpush1.bf16.msra.mxu0 %v401
    %513 = vmatprep.subr.bf16.mxu0 0
    %514 = vmatpush1.bf16.msra.mxu0 %v402
    %515 = vmatprep.subr.bf16.mxu0 0
    %516 = vmatpush1.bf16.msra.mxu0 %v403
    %517 = vmatprep.subr.bf16.mxu0 0
    %518 = vmatpush1.bf16.msra.mxu0 %v404
    %519 = vmatprep.subr.bf16.mxu0 0
    %520 = vmatpush1.bf16.msra.mxu0 %v405
    %521 = vmatprep.subr.bf16.mxu0 0
    %522 = vmatpush1.bf16.msra.mxu0 %v406
    %523 = vmatprep.subr.bf16.mxu0 0
    %524 = vmatpush1.bf16.msra.mxu0 %v407
    %525 = vmatprep.subr.bf16.mxu0 0
    %526 = vmatpush1.bf16.msra.mxu0 %v408
    %527 = vmatprep.mubr.bf16.mxu0 %v180
    %528 = vmatmul.mubr.bf16.gmra.mrb[0].mxu0 %v166
    %v529 = vpop.f32.mrb[0].mxu0
    %v530 = vadd.f32 %v140, %v529
    %v531 = vpop.f32.mrb[0].mxu0
    %v532 = vpop.f32.mrb[0].mxu0
    %v533 = vpop.f32.mrb[0].mxu0
    %534 = vdwg.mxu0
    %535 = vmatprep.subr.bf16.mxu0 0
    %536 = vmatpush1.bf16.msra.mxu0 %v409
    %537 = vmatprep.subr.bf16.mxu0 0
    %538 = vmatpush1.bf16.msra.mxu0 %v410
    %539 = vmatprep.subr.bf16.mxu0 0
    %540 = vmatpush1.bf16.msra.mxu0 %v411
    %541 = vmatprep.subr.bf16.mxu0 0
    %542 = vmatpush1.bf16.msra.mxu0 %v412
    %543 = vmatprep.subr.bf16.mxu0 0
    %544 = vmatpush1.bf16.msra.mxu0 %v413
    %545 = vmatprep.subr.bf16.mxu0 0
    %546 = vmatpush1.bf16.msra.mxu0 %v414
    %547 = vmatprep.subr.bf16.mxu0 0
    %548 = vmatpush1.bf16.msra.mxu0 %v415
    %549 = vmatprep.subr.bf16.mxu0 0
    %550 = vmatpush1.bf16.msra.mxu0 %v416
    %551 = vmatprep.subr.bf16.mxu0 0
    %552 = vmatpush1.bf16.msra.mxu0 %v417
    %553 = vmatprep.subr.bf16.mxu0 0
    %554 = vmatpush1.bf16.msra.mxu0 %v418
    %555 = vmatprep.subr.bf16.mxu0 0
    %556 = vmatpush1.bf16.msra.mxu0 %v419
    %557 = vmatprep.subr.bf16.mxu0 0
    %558 = vmatpush1.bf16.msra.mxu0 %v420
    %559 = vmatprep.subr.bf16.mxu0 0
    %560 = vmatpush1.bf16.msra.mxu0 %v421
    %561 = vmatprep.subr.bf16.mxu0 0
    %562 = vmatpush1.bf16.msra.mxu0 %v422
    %563 = vmatprep.subr.bf16.mxu0 0
    %564 = vmatpush1.bf16.msra.mxu0 %v423
    %565 = vmatprep.subr.bf16.mxu0 0
    %566 = vmatpush1.bf16.msra.mxu0 %v424
    %567 = vmatprep.mubr.bf16.mxu0 %v190
    %568 = vmatmul.mubr.bf16.gmra.mrb[0].mxu0 %v188
    %v569 = vpop.f32.mrb[0].mxu0
    %v570 = vadd.f32 %v530, %v569
    %v571 = vpop.f32.mrb[0].mxu0
    %v572 = vpop.f32.mrb[0].mxu0
    %v573 = vpop.f32.mrb[0].mxu0
    %574 = vdwg.mxu0
    %575 = vmatprep.subr.bf16.mxu0 0
    %576 = vmatpush1.bf16.msra.mxu0 %v425
    %577 = vmatprep.subr.bf16.mxu0 0
    %578 = vmatpush1.bf16.msra.mxu0 %v426
    %579 = vmatprep.subr.bf16.mxu0 0
    %580 = vmatpush1.bf16.msra.mxu0 %v427
    %581 = vmatprep.subr.bf16.mxu0 0
    %582 = vmatpush1.bf16.msra.mxu0 %v428
    %583 = vmatprep.subr.bf16.mxu0 0
    %584 = vmatpush1.bf16.msra.mxu0 %v429
    %585 = vmatprep.subr.bf16.mxu0 0
    %586 = vmatpush1.bf16.msra.mxu0 %v430
    %587 = vmatprep.subr.bf16.mxu0 0
    %588 = vmatpush1.bf16.msra.mxu0 %v431
    %589 = vmatprep.subr.bf16.mxu0 0
    %590 = vmatpush1.bf16.msra.mxu0 %v432
    %591 = vmatprep.subr.bf16.mxu0 0
    %592 = vmatpush1.bf16.msra.mxu0 %v433
    %593 = vmatprep.subr.bf16.mxu0 0
    %594 = vmatpush1.bf16.msra.mxu0 %v434
    %595 = vmatprep.subr.bf16.mxu0 0
    %596 = vmatpush1.bf16.msra.mxu0 %v435
    %597 = vmatprep.subr.bf16.mxu0 0
    %598 = vmatpush1.bf16.msra.mxu0 %v436
    %599 = vmatprep.subr.bf16.mxu0 0
    %600 = vmatpush1.bf16.msra.mxu0 %v437
    %601 = vmatprep.subr.bf16.mxu0 0
    %602 = vmatpush1.bf16.msra.mxu0 %v438
    %603 = vmatprep.subr.bf16.mxu0 0
    %604 = vmatpush1.bf16.msra.mxu0 %v439
    %605 = vmatprep.subr.bf16.mxu0 0
    %606 = vmatpush1.bf16.msra.mxu0 %v440
    %607 = vmatprep.mubr.bf16.mxu0 %v187
    %608 = vmatmul.mubr.bf16.gmra.mrb[0].mxu0 %v173
    %v609 = vpop.f32.mrb[0].mxu0
    %v610 = vadd.f32 %v570, %v609
    %v611 = vpop.f32.mrb[0].mxu0
    %v612 = vpop.f32.mrb[0].mxu0
    %v613 = vpop.f32.mrb[0].mxu0
    %614 = vdwg.mxu0
    %615 = vmatprep.subr.bf16.mxu0 0
    %616 = vmatpush1.bf16.msra.mxu0 %v441
    %617 = vmatprep.subr.bf16.mxu0 0
    %618 = vmatpush1.bf16.msra.mxu0 0
    %619 = vmatprep.subr.bf16.mxu0 0
    %620 = vmatpush1.bf16.msra.mxu0 0
    %621 = vmatprep.subr.bf16.mxu0 0
    %622 = vmatpush1.bf16.msra.mxu0 0
    %623 = vmatprep.subr.bf16.mxu0 0
    %624 = vmatpush1.bf16.msra.mxu0 0
    %625 = vmatprep.subr.bf16.mxu0 0
    %626 = vmatpush1.bf16.msra.mxu0 0
    %627 = vmatprep.subr.bf16.mxu0 0
    %628 = vmatpush1.bf16.msra.mxu0 0
    %629 = vmatprep.subr.bf16.mxu0 0
    %630 = vmatpush1.bf16.msra.mxu0 0
    %631 = vmatprep.subr.bf16.mxu0 0
    %632 = vmatpush1.bf16.msra.mxu0 0
    %633 = vmatprep.subr.bf16.mxu0 0
    %634 = vmatpush1.bf16.msra.mxu0 0
    %635 = vmatprep.subr.bf16.mxu0 0
    %636 = vmatpush1.bf16.msra.mxu0 0
    %637 = vmatprep.subr.bf16.mxu0 0
    %638 = vmatpush1.bf16.msra.mxu0 0
    %639 = vmatprep.subr.bf16.mxu0 0
    %640 = vmatpush1.bf16.msra.mxu0 0
    %641 = vmatprep.subr.bf16.mxu0 0
    %642 = vmatpush1.bf16.msra.mxu0 0
    %643 = vmatprep.subr.bf16.mxu0 0
    %644 = vmatpush1.bf16.msra.mxu0 0
    %645 = vmatprep.subr.bf16.mxu0 0
    %646 = vmatpush1.bf16.msra.mxu0 0
    %647 = vmatprep.mubr.bf16.mxu0 0
    %648 = vmatmul.mubr.bf16.gmra.mrb[0].mxu0 %v493
    %v649 = vpop.f32.mrb[0].mxu0
    %v650 = vadd.f32 %v610, %v649
    %v651 = vpop.f32.mrb[0].mxu0
    %v652 = vpop.f32.mrb[0].mxu0
    %v653 = vpop.f32.mrb[0].mxu0
    %654 = vdwg.mxu0
    %v655 = vmax.f32 %v650, 0.0
    %v656 = vld [vmem:[%s3] sm:$0xff]
    %v657 = vld [vmem:[%s3 + $0x8] sm:$0xff]
    %v658 = vld [vmem:[%s3 + $0x10] sm:$0xff]
    %v659 = vld [vmem:[%s3 + $0x18] sm:$0xff]
    %v660 = vld [vmem:[%s3 + $0x20] sm:$0xff]
    %v661 = vld [vmem:[%s3 + $0x28] sm:$0xff]
    %v662 = vld [vmem:[%s3 + $0x30] sm:$0xff]
    %v663 = vld [vmem:[%s3 + $0x38] sm:$0xff]
    %v664 = vld [vmem:[%s3 + $0x40] sm:$0xff]
    %v665 = vld [vmem:[%s3 + $0x48] sm:$0xff]
    %v666 = vld [vmem:[%s3 + $0x50] sm:$0xff]
    %v667 = vld [vmem:[%s3 + $0x58] sm:$0xff]
    %v668 = vld [vmem:[%s3 + $0x60] sm:$0xff]
    %v669 = vld [vmem:[%s3 + $0x68] sm:$0xff]
    %v670 = vld [vmem:[%s3 + $0x70] sm:$0xff]
    %v671 = vld [vmem:[%s3 + $0x78] sm:$0xff]
    %v672 = vld [vmem:[%s4] sm:$0x1]
    %v674 = vlaneseq
    %v675 = vshrl.u32 %v674, 7
    %v676 = vsub.s32 0, %v675
    %v677 = vrot.slane %v672, %v676
    %679 = vmatprep.subr.mxu0 0.0
    %680 = vmatpush1.msra.mxu0 %v656
    %681 = vmatprep.subr.mxu0 0.0
    %682 = vmatpush1.msra.mxu0 %v657
    %683 = vmatprep.subr.mxu0 0.0
    %684 = vmatpush1.msra.mxu0 %v658
    %685 = vmatprep.subr.mxu0 0.0
    %686 = vmatpush1.msra.mxu0 %v659
    %687 = vmatprep.subr.mxu0 0.0
    %688 = vmatpush1.msra.mxu0 %v660
    %689 = vmatprep.subr.mxu0 0.0
    %690 = vmatpush1.msra.mxu0 %v661
    %691 = vmatprep.subr.mxu0 0.0
    %692 = vmatpush1.msra.mxu0 %v662
    %693 = vmatprep.subr.mxu0 0.0
    %694 = vmatpush1.msra.mxu0 %v663
    %695 = vmatprep.subr.mxu0 0.0
    %696 = vmatpush1.msra.mxu0 %v664
    %697 = vmatprep.subr.mxu0 0.0
    %698 = vmatpush1.msra.mxu0 %v665
    %699 = vmatprep.subr.mxu0 0.0
    %700 = vmatpush1.msra.mxu0 %v666
    %701 = vmatprep.subr.mxu0 0.0
    %702 = vmatpush1.msra.mxu0 %v667
    %703 = vmatprep.subr.mxu0 0.0
    %704 = vmatpush1.msra.mxu0 %v668
    %705 = vmatprep.subr.mxu0 0.0
    %706 = vmatpush1.msra.mxu0 %v669
    %707 = vmatprep.subr.mxu0 0.0
    %708 = vmatpush1.msra.mxu0 %v670
    %709 = vmatprep.subr.mxu0 0.0
    %710 = vmatpush1.msra.mxu0 %v671
    %711 = vmatprep.subr.mxu0 0.0
    %712 = vmatpush1.msra.mxu0 0.0
    %713 = vmatprep.subr.mxu0 0.0
    %714 = vmatpush1.msra.mxu0 0.0
    %715 = vmatprep.subr.mxu0 0.0
    %716 = vmatpush1.msra.mxu0 0.0
    %717 = vmatprep.subr.mxu0 0.0
    %718 = vmatpush1.msra.mxu0 0.0
    %719 = vmatprep.subr.mxu0 0.0
    %720 = vmatpush1.msra.mxu0 0.0
    %721 = vmatprep.subr.mxu0 0.0
    %722 = vmatpush1.msra.mxu0 0.0
    %723 = vmatprep.subr.mxu0 0.0
    %724 = vmatpush1.msra.mxu0 0.0
    %725 = vmatprep.subr.mxu0 0.0
    %726 = vmatpush1.msra.mxu0 0.0
    %727 = vmatprep.subr.mxu0 0.0
    %728 = vmatpush1.msra.mxu0 0.0
    %729 = vmatprep.subr.mxu0 0.0
    %730 = vmatpush1.msra.mxu0 0.0
    %731 = vmatprep.subr.mxu0 0.0
    %732 = vmatpush1.msra.mxu0 0.0
    %733 = vmatprep.subr.mxu0 0.0
    %734 = vmatpush1.msra.mxu0 0.0
    %735 = vmatprep.subr.mxu0 0.0
    %736 = vmatpush1.msra.mxu0 0.0
    %737 = vmatprep.subr.mxu0 0.0
    %738 = vmatpush1.msra.mxu0 0.0
    %739 = vmatprep.subr.mxu0 0.0
    %740 = vmatpush1.msra.mxu0 0.0
    %741 = vmatprep.subr.mxu0 0.0
    %742 = vmatpush1.msra.mxu0 0.0
    %743 = vmatprep.mubr.f32.mxu0 0.0
    %744 = vmatmul.mubr.f32.gmra.mrb[0].mxu0 %v655
    %v745 = vpop.f32.mrb[0].mxu0
    %v746 = vadd.f32 %v677, %v745
    %v747 = vpop.f32.mrb[0].mxu0
    %748 = vdwg.mxu0
    %vm749 = vcmask 74752
    %v750 = vsel %vm749, %v746, -inf
    %751 = vmax.xlane.f32.xlu0 %v750
    %v752 = vpop.xlane.xlu0 %751
    %v753 = vsub.f32 %v746, %v752
    %v754 = vmul.f32 %v753, 1.442695
    %v755 = vpow.pop %v754
    %v756 = vsel %vm749, %v755, 0.0
    %757 = vadd.xlane.f32.xlu0 %v756
    %v758 = vpop.xlane.xlu0 %757
    %v759 = vlog2.pop %v758
    %v760 = vmul.f32 %v759, 0.6931472
    %v761 = vsub.f32 %v753, %v760
    %762 = vst.msk [vmem:[#allocation5] sm:$0x3] %vm749, %v761
    // Predicated region
    $region26: #{tpu_custom_call.1} parent=1 // pred_check
      _
    $region27: #{tpu_custom_call.1} parent=1 // pred_check_branch
      %764 = sbr.rel (0) target = $region29
    $region28: #{tpu_custom_call.1} parent=1 // pred_region
      %s766 = ssub.s32 32, 32
      %767 = vsyncadd [#allocation4], %s766
      %s769 = sshll.u32 [#allocation5], 4
      %s770 = int_to_ptr.vmem [resolvable:$true] %s769
      %772 = dma.vmem_to_hbm [thread:$0]  %s770, 32, %s5, [#allocation4]
    $region29: #{tpu_custom_call.1} parent=1 // pred_fallthru
      _
    // Predicated region
    $region30: #{tpu_custom_call.1} parent=1 // pred_check
      _
    $region31: #{tpu_custom_call.1} parent=1 // pred_check_branch
      %774 = sbr.rel (0) target = $region33
    $region32: #{tpu_custom_call.1} parent=1 // pred_region
      %775 = dma.done [#allocation4], 32
    $region33: #{tpu_custom_call.1} parent=1 // pred_fallthru
      _
    %776 = vsyncpa [#allocation3], 1
    %777 = vsyncpa [#allocation4], 1

</llo_original>
